<compile_context>
chip_gen: v7x
topology: tpu7x:2x2x1
jax: 0.10.0
libtpu: 0.0.40
codegen_flags: <defaults>
</compile_context>

<pallas_src>
import functools
import math

import numpy as np
import jax
import jax.numpy as jnp
from jax.experimental import pallas as pl
from jax.experimental.pallas import tpu as pltpu

VAR_SIZE = 2          # decoder output width from the PyTorch module
V_PAD = 128           # lane-dense padded decoder width
LN_EPS = 1e-5


def _round_up(x, m):
    return (x + m - 1) // m * m


@functools.lru_cache(maxsize=1)
def _single_buffer_supported():
    """Probe (once) whether pipeline_mode=pl.Buffered(1) is accepted and
    numerically sound for grid-invariant blocks on this jax/TPU build."""
    try:
        def _k(x_ref, o_ref):
            o_ref[...] = x_ref[...] * 2.0

        f = pl.pallas_call(
            _k,
            out_shape=jax.ShapeDtypeStruct((16, 128), jnp.float32),
            grid=(2,),
            in_specs=[pl.BlockSpec((8, 128), lambda i: (0, 0),
                                   pipeline_mode=pl.Buffered(1))],
            out_specs=pl.BlockSpec((8, 128), lambda i: (i, 0)),
        )
        y = jax.block_until_ready(f(np.ones((8, 128), np.float32)))
        return bool(jnp.allclose(y, 2.0))
    except Exception:
        return False


def _pick_row_tile(M, *, tm_max=512, row_align=8, max_waste=0.125, min_steps=2):
    """Row-tile selection: as large as possible (MXU occupancy, step-overhead
    amortization) subject to (a) zero-pad waste <= max_waste and (b) >=
    min_steps grid steps whenever the input is big enough (v7x megacore)."""
    M = max(int(M), 1)
    M_al = _round_up(M, row_align)
    cap = _round_up(tm_max, row_align)
    if M_al >= min_steps * row_align:
        cap = min(cap, _round_up((M_al + min_steps - 1) // min_steps, row_align))
    tm = max(row_align, cap)
    while tm > row_align:
        M_pad = _round_up(M, tm)
        if (M_pad - M) / M_pad <= max_waste:
            break
        tm = max(row_align, _round_up(tm // 2, row_align))
    return tm, _round_up(M, tm)


def _lm_head_kernel(x_ref, wd_ref, bd_ref, wdec_ref, bdec_ref, o_ref, *, eps, inv_h):
    # x_ref: (TM, H)                wd_ref: (H, H)    [compute dtype, pre-transposed]
    # bd_ref: (1, H) f32            wdec_ref: (H, V_PAD)  [gamma folded in, lane-padded]
    # bdec_ref: (1, V_PAD) f32 [beta folded in]        o_ref: (TM, V_PAD)
    x = x_ref[...].astype(wd_ref.dtype)          # no-op if features already match

    # dense: x @ W_dense^T + b   (MXU, f32 accumulation)
    h = jnp.dot(x, wd_ref[...], preferred_element_type=jnp.float32)
    h = h + bd_ref[...]

    # exact (erf-based) GELU, matching torch.nn.functional.gelu default — f32
    h = 0.5 * h * (1.0 + jax.lax.erf(h * (1.0 / math.sqrt(2.0))))

    # LayerNorm statistics in ONE pass over h (f32): var = E[h^2] - mean^2.
    s1 = jnp.sum(h, axis=-1, keepdims=True)
    s2 = jnp.sum(h * h, axis=-1, keepdims=True)
    mean = s1 * inv_h
    var = jnp.maximum(s2 * inv_h - mean * mean, 0.0)
    rstd = jax.lax.rsqrt(var + eps)
    hn = (h - mean) * rstd                        # gamma/beta folded into decoder

    # decoder: hn @ (diag(gamma) W_dec^T) + (beta W_dec^T + b_dec), lane-dense N
    out = jnp.dot(hn.astype(wdec_ref.dtype), wdec_ref[...],
                  preferred_element_type=jnp.float32)
    out = out + bdec_ref[...]
    o_ref[...] = out.astype(o_ref.dtype)


def prepare_params(params, compute_dtype=jnp.bfloat16):
    """One-time weight prep: transpose, cast matmul operands, lane-pad the
    decoder, and fold the LayerNorm affine (gamma, beta) into the decoder."""
    dense_w = jnp.asarray(params["dense_w"], jnp.float32)        # (H, H)
    H = dense_w.shape[0]
    wd_t = dense_w.T.astype(compute_dtype)                       # (H, H)
    bd = jnp.asarray(params["dense_b"], jnp.float32).reshape(1, H)

    g = jnp.asarray(params["ln_w"], jnp.float32)                 # (H,)
    b = jnp.asarray(params["ln_b"], jnp.float32)                 # (H,)
    dec_w = jnp.asarray(params["dec_w"], jnp.float32)            # (VAR_SIZE, H)
    dec_b = jnp.asarray(params["dec_b"], jnp.float32)            # (VAR_SIZE,)

    # Exact fold (computed in f32):  (hn*g + b) @ Wd^T + bd
    #   == hn @ (diag(g) @ Wd^T) + (b @ Wd^T + bd)
    wdec_fold = (dec_w * g[None, :]).T                           # (H, VAR_SIZE)
    bdec_fold = dec_b + b @ dec_w.T                              # (VAR_SIZE,)

    wdec_t = jnp.zeros((H, V_PAD), compute_dtype)
    wdec_t = wdec_t.at[:, :VAR_SIZE].set(wdec_fold.astype(compute_dtype))
    bdec = jnp.zeros((1, V_PAD), jnp.float32)
    bdec = bdec.at[:, :VAR_SIZE].set(bdec_fold.reshape(1, VAR_SIZE))
    return {"wd_t": wd_t, "bd": bd, "wdec_t": wdec_t, "bdec": bdec}


def roberta_lm_head3(features, prepared, *, tm=512):
    """features: [B, S, H] -> logits [B, S, VAR_SIZE]."""
    B, S, H = features.shape
    M = B * S

    # 2-byte features (bf16) need a 16-row sublane multiple; f32 needs 8.
    row_align = max(8, 32 // jnp.dtype(features.dtype).itemsize)
    tm_eff, M_pad = _pick_row_tile(M, tm_max=tm, row_align=row_align)

    x2d = features.reshape(M, H)
    if M_pad != M:
        x2d = jnp.pad(x2d, ((0, M_pad - M), (0, 0)))

    single_buf = _single_buffer_supported()

    def inv_spec(shape):
        # Grid-invariant operand: fetched once; single-buffer it when supported.
        if single_buf:
            return pl.BlockSpec(shape, lambda i: (0,) * len(shape),
                                pipeline_mode=pl.Buffered(1))
        return pl.BlockSpec(shape, lambda i: (0,) * len(shape))

    kernel = functools.partial(_lm_head_kernel, eps=LN_EPS, inv_h=1.0 / H)

    out = pl.pallas_call(
        kernel,
        out_shape=jax.ShapeDtypeStruct((M_pad, V_PAD), features.dtype),
        grid_spec=pltpu.PrefetchScalarGridSpec(
            num_scalar_prefetch=0,
            grid=(M_pad // tm_eff,),
            in_specs=[
                pl.BlockSpec((tm_eff, H), lambda i: (i, 0)),   # streamed rows
                inv_spec((H, H)),                              # dense W^T (resident)
                inv_spec((1, H)),                              # dense bias
                inv_spec((H, V_PAD)),                          # decoder W^T (gamma-folded)
                inv_spec((1, V_PAD)),                          # decoder bias (beta-folded)
            ],
            out_specs=pl.BlockSpec((tm_eff, V_PAD), lambda i: (i, 0)),
        ),
        compiler_params=pltpu.CompilerParams(
            dimension_semantics=("parallel",)),
    )(x2d, prepared["wd_t"], prepared["bd"], prepared["wdec_t"], prepared["bdec"])

    return out[:M, :VAR_SIZE].reshape(B, S, VAR_SIZE)


def _reference(features, params):
    x = features.astype(jnp.float32)
    h = x @ params["dense_w"].T + params["dense_b"]
    h = 0.5 * h * (1.0 + jax.lax.erf(h / math.sqrt(2.0)))
    mean = jnp.mean(h, axis=-1, keepdims=True)
    var = jnp.mean(jnp.square(h - mean), axis=-1, keepdims=True)
    hn = (h - mean) / jnp.sqrt(var + LN_EPS)
    hn = hn * params["ln_w"] + params["ln_b"]
    return hn @ params["dec_w"].T + params["dec_b"]


if __name__ == "__main__":
    B, S, H = 2, 8, 32  # small shapes consistent with the module

    key = jax.random.PRNGKey(0)
    ks = jax.random.split(key, 7)

    features = jax.random.normal(ks[0], (B, S, H), dtype=jnp.float32)

    params = {
        "dense_w": jax.random.normal(ks[1], (H, H), dtype=jnp.float32) * 0.05,
        "dense_b": jax.random.normal(ks[2], (H,), dtype=jnp.float32) * 0.02,
        "ln_w": 1.0 + 0.1 * jax.random.normal(ks[3], (H,), dtype=jnp.float32),
        "ln_b": 0.05 * jax.random.normal(ks[4], (H,), dtype=jnp.float32),
        "dec_w": jax.random.normal(ks[5], (VAR_SIZE, H), dtype=jnp.float32) * 0.05,
        "dec_b": jnp.zeros((VAR_SIZE,), dtype=jnp.float32),  # module inits bias to zeros
    }

    # Probe Buffered(1) support once, eagerly (result is cached for later jits).
    _single_buffer_supported()

    ref = _reference(features, params)
    head = jax.jit(roberta_lm_head3)

    # 1) exact f32 compute path — tight tolerance vs. the f32 reference.
    prep_f32 = prepare_params(params, compute_dtype=jnp.float32)
    out_f32 = jax.block_until_ready(head(features, prep_f32))
    assert out_f32.shape == (B, S, VAR_SIZE)
    assert jnp.allclose(out_f32, ref, atol=5e-5, rtol=1e-4), "f32 path mismatch"

    # 2) default bf16-matmul path (f32 accumulation / LN) — bf16-level tolerance.
    prep_bf16 = prepare_params(params)
    out_bf16 = jax.block_until_ready(head(features, prep_bf16))
    assert out_bf16.shape == (B, S, VAR_SIZE)
    assert jnp.allclose(out_bf16, ref, atol=4e-2, rtol=4e-2), "bf16 path mismatch"

    # 3) ragged row count — exercises the padding-aware tile ladder & row pad.
    B2, S2 = 3, 5
    feats2 = jax.random.normal(ks[6], (B2, S2, H), dtype=jnp.float32)
    ref2 = _reference(feats2, params)
    out2 = jax.block_until_ready(head(feats2, prep_f32))
    assert out2.shape == (B2, S2, VAR_SIZE)
    assert jnp.allclose(out2, ref2, atol=5e-5, rtol=1e-4), "ragged-M mismatch"

    print("KERNEL_OK")
</pallas_src>

<mosaic_0001>
module attributes {stable_mosaic.version = 11 : i64} {
  func.func @_k(%arg0: i32, %arg1: memref<8x128xf32, #tpu.memory_space<vmem>>, %arg2: memref<8x128xf32, #tpu.memory_space<vmem>>) attributes {dimension_semantics = [#tpu.dimension_semantics<arbitrary>], iteration_bounds = array<i64: 2>, scalar_prefetch = 0 : i64, scratch_operands = 0 : i64, tpu.core_type = #tpu.core_type<tc>, window_params = [{pipeline_mode = #tpu.pipeline_mode<synchronous>, transform_indices = @transform_0, window_bounds = array<i64: 8, 128>}, {transform_indices = @transform_1, window_bounds = array<i64: 8, 128>}]} {
    %c0 = arith.constant 0 : index
    %c0_0 = arith.constant 0 : index
    %0 = vector.load %arg1[%c0, %c0_0] : memref<8x128xf32, #tpu.memory_space<vmem>>, vector<8x128xf32>
    %cst = arith.constant 2.000000e+00 : f32
    %1 = vector.broadcast %cst : f32 to vector<8x128xf32>
    %2 = arith.mulf %0, %1 : vector<8x128xf32>
    %c0_1 = arith.constant 0 : index
    %c0_2 = arith.constant 0 : index
    %3 = vector.load %arg2[%c0_1, %c0_2] : memref<8x128xf32, #tpu.memory_space<vmem>>, vector<8x128xf32>
    tpu.vector_store %arg2[%c0_1, %c0_2], %2 {strides = array<i32>} : memref<8x128xf32, #tpu.memory_space<vmem>>, vector<8x128xf32>,
    return
  }
  func.func @transform_0(%arg0: i32) -> (i32, i32) {
    %c0_i32 = arith.constant 0 : i32
    %c0_i32_0 = arith.constant 0 : i32
    %c0_i32_1 = arith.constant 0 : i32
    return %c0_i32, %c0_i32_0 : i32, i32
  }
  func.func @transform_1(%arg0: i32) -> (i32, i32) {
    %c0_i32 = arith.constant 0 : i32
    %c0_i32_0 = arith.constant 0 : i32
    return %arg0, %c0_i32 : i32, i32
  }
}

module attributes {stable_mosaic.version = 11 : i64} {
  func.func @_lm_head_kernel(%arg0: i32, %arg1: memref<8x32xf32, #tpu.memory_space<vmem>>, %arg2: memref<32x32xf32, #tpu.memory_space<vmem>>, %arg3: memref<1x32xf32, #tpu.memory_space<vmem>>, %arg4: memref<32x128xf32, #tpu.memory_space<vmem>>, %arg5: memref<1x128xf32, #tpu.memory_space<vmem>>, %arg6: memref<8x128xf32, #tpu.memory_space<vmem>>) attributes {dimension_semantics = [#tpu.dimension_semantics<parallel>], iteration_bounds = array<i64: 2>, scalar_prefetch = 0 : i64, scratch_operands = 0 : i64, tpu.core_type = #tpu.core_type<tc>, window_params = [{transform_indices = @transform_0, window_bounds = array<i64: 8, 32>}, {pipeline_mode = #tpu.pipeline_mode<synchronous>, transform_indices = @transform_1, window_bounds = array<i64: 32, 32>}, {pipeline_mode = #tpu.pipeline_mode<synchronous>, transform_indices = @transform_2, window_bounds = array<i64: 1, 32>}, {pipeline_mode = #tpu.pipeline_mode<synchronous>, transform_indices = @transform_3, window_bounds = array<i64: 32, 128>}, {pipeline_mode = #tpu.pipeline_mode<synchronous>, transform_indices = @transform_4, window_bounds = array<i64: 1, 128>}, {transform_indices = @transform_5, window_bounds = array<i64: 8, 128>}]} {
    %c0 = arith.constant 0 : index
    %c0_0 = arith.constant 0 : index
    %0 = vector.load %arg1[%c0, %c0_0] : memref<8x32xf32, #tpu.memory_space<vmem>>, vector<8x32xf32>
    %c0_1 = arith.constant 0 : index
    %c0_2 = arith.constant 0 : index
    %1 = vector.load %arg2[%c0_1, %c0_2] : memref<32x32xf32, #tpu.memory_space<vmem>>, vector<32x32xf32>
    %cst = arith.constant dense<0.000000e+00> : vector<8x32xf32>
    %2 = tpu.matmul %0, %1, %cst {dimension_numbers = #tpu.dot_dimension_numbers<[1], [0], [0], [1], [0, 0, 1, 1], [], []>} : vector<8x32xf32>, vector<32x32xf32>, vector<8x32xf32> -> vector<8x32xf32>
    %c0_3 = arith.constant 0 : index
    %c0_4 = arith.constant 0 : index
    %3 = vector.load %arg3[%c0_3, %c0_4] : memref<1x32xf32, #tpu.memory_space<vmem>>, vector<1x32xf32>
    %4 = vector.broadcast %3 : vector<1x32xf32> to vector<8x32xf32>
    %5 = arith.addf %2, %4 : vector<8x32xf32>
    %cst_5 = arith.constant 5.000000e-01 : f32
    %6 = vector.broadcast %cst_5 : f32 to vector<8x32xf32>
    %7 = arith.mulf %6, %5 : vector<8x32xf32>
    %cst_6 = arith.constant 0.707106769 : f32
    %8 = vector.broadcast %cst_6 : f32 to vector<8x32xf32>
    %9 = arith.mulf %5, %8 : vector<8x32xf32>
    %10 = math.erf %9 : vector<8x32xf32>
    %cst_7 = arith.constant 1.000000e+00 : f32
    %11 = vector.broadcast %cst_7 : f32 to vector<8x32xf32>
    %12 = arith.addf %11, %10 : vector<8x32xf32>
    %13 = arith.mulf %7, %12 : vector<8x32xf32>
    %cst_8 = arith.constant dense<0.000000e+00> : vector<8xf32>
    %14 = vector.multi_reduction <add>, %13, %cst_8 [1] : vector<8x32xf32> to vector<8xf32>
    %15 = vector.shape_cast %14 : vector<8xf32> to vector<8x1xf32>
    %16 = arith.mulf %13, %13 : vector<8x32xf32>
    %cst_9 = arith.constant dense<0.000000e+00> : vector<8xf32>
    %17 = vector.multi_reduction <add>, %16, %cst_9 [1] : vector<8x32xf32> to vector<8xf32>
    %18 = vector.shape_cast %17 : vector<8xf32> to vector<8x1xf32>
    %cst_10 = arith.constant 3.125000e-02 : f32
    %19 = vector.broadcast %cst_10 : f32 to vector<8x1xf32>
    %20 = arith.mulf %15, %19 : vector<8x1xf32>
    %cst_11 = arith.constant 3.125000e-02 : f32
    %21 = vector.broadcast %cst_11 : f32 to vector<8x1xf32>
    %22 = arith.mulf %18, %21 : vector<8x1xf32>
    %23 = arith.mulf %20, %20 : vector<8x1xf32>
    %24 = arith.subf %22, %23 : vector<8x1xf32>
    %cst_12 = arith.constant 0.000000e+00 : f32
    %25 = vector.broadcast %cst_12 : f32 to vector<8x1xf32>
    %26 = arith.maximumf %24, %25 : vector<8x1xf32>
    %cst_13 = arith.constant 9.99999974E-6 : f32
    %27 = vector.broadcast %cst_13 : f32 to vector<8x1xf32>
    %28 = arith.addf %26, %27 : vector<8x1xf32>
    %29 = math.rsqrt %28 : vector<8x1xf32>
    %30 = vector.broadcast %20 : vector<8x1xf32> to vector<8x32xf32>
    %31 = arith.subf %13, %30 : vector<8x32xf32>
    %32 = vector.broadcast %29 : vector<8x1xf32> to vector<8x32xf32>
    %33 = arith.mulf %31, %32 : vector<8x32xf32>
    %c0_14 = arith.constant 0 : index
    %c0_15 = arith.constant 0 : index
    %34 = vector.load %arg4[%c0_14, %c0_15] : memref<32x128xf32, #tpu.memory_space<vmem>>, vector<32x128xf32>
    %cst_16 = arith.constant dense<0.000000e+00> : vector<8x128xf32>
    %35 = tpu.matmul %33, %34, %cst_16 {dimension_numbers = #tpu.dot_dimension_numbers<[1], [0], [0], [1], [0, 0, 1, 1], [], []>} : vector<8x32xf32>, vector<32x128xf32>, vector<8x128xf32> -> vector<8x128xf32>
    %c0_17 = arith.constant 0 : index
    %c0_18 = arith.constant 0 : index
    %36 = vector.load %arg5[%c0_17, %c0_18] : memref<1x128xf32, #tpu.memory_space<vmem>>, vector<1x128xf32>
    %37 = vector.broadcast %36 : vector<1x128xf32> to vector<8x128xf32>
    %38 = arith.addf %35, %37 : vector<8x128xf32>
    %c0_19 = arith.constant 0 : index
    %c0_20 = arith.constant 0 : index
    %39 = vector.load %arg6[%c0_19, %c0_20] : memref<8x128xf32, #tpu.memory_space<vmem>>, vector<8x128xf32>
    tpu.vector_store %arg6[%c0_19, %c0_20], %38 {strides = array<i32>} : memref<8x128xf32, #tpu.memory_space<vmem>>, vector<8x128xf32>,
    return
  }
  func.func @transform_0(%arg0: i32) -> (i32, i32) {
    %c0_i32 = arith.constant 0 : i32
    %c0_i32_0 = arith.constant 0 : i32
    return %arg0, %c0_i32 : i32, i32
  }
  func.func @transform_1(%arg0: i32) -> (i32, i32) {
    %c0_i32 = arith.constant 0 : i32
    %c0_i32_0 = arith.constant 0 : i32
    %c0_i32_1 = arith.constant 0 : i32
    return %c0_i32, %c0_i32_0 : i32, i32
  }
  func.func @transform_2(%arg0: i32) -> (i32, i32) {
    %c0_i32 = arith.constant 0 : i32
    %c0_i32_0 = arith.constant 0 : i32
    %c0_i32_1 = arith.constant 0 : i32
    return %c0_i32, %c0_i32_0 : i32, i32
  }
  func.func @transform_3(%arg0: i32) -> (i32, i32) {
    %c0_i32 = arith.constant 0 : i32
    %c0_i32_0 = arith.constant 0 : i32
    %c0_i32_1 = arith.constant 0 : i32
    return %c0_i32, %c0_i32_0 : i32, i32
  }
  func.func @transform_4(%arg0: i32) -> (i32, i32) {
    %c0_i32 = arith.constant 0 : i32
    %c0_i32_0 = arith.constant 0 : i32
    %c0_i32_1 = arith.constant 0 : i32
    return %c0_i32, %c0_i32_0 : i32, i32
  }
  func.func @transform_5(%arg0: i32) -> (i32, i32) {
    %c0_i32 = arith.constant 0 : i32
    %c0_i32_0 = arith.constant 0 : i32
    return %arg0, %c0_i32 : i32, i32
  }
}

</mosaic_0001>

<llo_original>
// kernel: tpu_custom_call.1
$region0: #{tpu_custom_call.1}
  #allocation0 [shape = 'u32[]', space=smem, size = 0x4, offset = 0x4, fixed_abs, tag = 'smem constant byte address 0x4 - core index']
  #allocation1 [shape = 'u32[144,128]{1,0:T(1,128)}', space=vmem, size = 0x12000, scoped, tag = 'internal scratch']
  %s0 = inlined_call_operand.hbm [shape: f32[8,128], index: 0, kind: input, shape index: {}]
  %s1 = inlined_call_operand.hbm [shape: f32[16,128], index: 1, kind: output, shape index: {}]
  %s2 = sld [smem:[#allocation0]]
  $region41: #{tpu_custom_call.1} parent=0
    _
  %s4 = ssub.s32 1, %s2
  %s5 = scalar_select 0, %s4, %s2
  $region1: #{tpu_custom_call.1} parent=0
    #allocation2 [shape = 'u8[4096]{0}', space=vmem, size = 0x1000, scoped, tag = 'input window, operand 0, single buffered']
    #allocation3 [shape = 's32[2]{0}', space=sflag, size = 0x8, scoped, tag = 'scoped memory for tpu_custom_call.1']
    #allocation4 [shape = 's32[2]{0}', space=sflag, size = 0x8, scoped, tag = 'scoped memory for tpu_custom_call.1']
    #allocation5 [shape = 'u8[8192]{0}', space=vmem, size = 0x2000, scoped, tag = 'output window, operand 0']
    %6 = vsyncpa [#allocation3], 0
    %7 = vsyncpa [#allocation4], 0
    %s8 = scalar_lea.sflag [#allocation4], 1
    %9 = vsyncpa %s8, 0
    loop: start=0, step=1, limit=4
    $region2: #{tpu_custom_call.1} parent=1 // loop_pre_header
      _
    $region3: #{tpu_custom_call.1} parent=1 // loop_header
      %s11 = sphi 0, %s15
      %p12 = scmp.ge.s32.totalorder %s11, 4
      %s19 = sphi 0, %s19
      %s21 = sphi 0, %s19
      %s22 = sphi 0, %s21
      %s36 = sphi 0, %s22
      %s42 = sphi 0, %s44
      %s45 = sphi 0, %s42
      %s46 = sphi 0, %s45
      %s62 = sphi 0, %s46
    $region4: #{tpu_custom_call.1} parent=1 // loop_header_branch
      %14 = sbr.rel (%p12) target = $region8
    $region5: #{tpu_custom_call.1} parent=1 // loop_body
      %s16 = ssub.s32 %s11, 1
      %s17 = ssub.s32 %s11, 2
      %s18 = sadd.s32 %s11, 1
      %s20 = sadd.s32 %s19, 1
      %p23 = scmp.eq.s32.totalorder %s11, 1
      %p24 = scmp.ne.s32.totalorder %s19, %s21
      %p25 = scmp.eq.s32.totalorder %s11, 0
      %p26 = por %p24, %p25
      %p27 = scmp.ne.s32.totalorder %s19, %s21
      %p28 = scmp.eq.s32.totalorder %s16, 1
      %p29 = por %p27, %p28
      %p30 = scmp.ne.s32.totalorder %s21, %s22
      %p31 = scmp.eq.s32.totalorder %s16, 0
      %p32 = por %p30, %p31
      %p33 = scmp.ne.s32.totalorder %s21, %s22
      %p34 = scmp.eq.s32.totalorder %s17, 1
      %p35 = por %p33, %p34
      %p37 = scmp.ne.s32.totalorder %s22, %s36
      %p38 = scmp.eq.s32.totalorder %s17, 0
      %p39 = por %p37, %p38
      %s40 = ssub.s32 %s11, %s18
      %p41 = scmp.eq.s32.totalorder %s40, 0
      %s43 = sadd.s32 %s42, 1
      %s44 = scalar_select %p41, %s42, %s43
      %p47 = pneg %p41
      %p48 = scmp.eq.s32.totalorder %s11, 1
      %p49 = por %p47, %p48
      %p50 = scmp.ne.s32.totalorder %s42, %s45
      %p51 = scmp.eq.s32.totalorder %s11, 0
      %p52 = por %p50, %p51
      %p53 = scmp.ne.s32.totalorder %s42, %s45
      %p54 = scmp.eq.s32.totalorder %s16, 1
      %p55 = por %p53, %p54
      %p56 = scmp.ne.s32.totalorder %s45, %s46
      %p57 = scmp.eq.s32.totalorder %s16, 0
      %p58 = por %p56, %p57
      %p59 = scmp.ne.s32.totalorder %s45, %s46
      %p60 = scmp.eq.s32.totalorder %s17, 1
      %p61 = por %p59, %p60
      %p63 = scmp.ne.s32.totalorder %s46, %s62
      %p64 = scmp.eq.s32.totalorder %s17, 0
      %p65 = por %p63, %p64
      %p66 = scmp.le.s32.totalorder 1, %s11
      %p67 = scmp.lt.s32.totalorder %s11, 3
      %p68 = pnand %p66, %p67
      %p69 = pneg %p68
      // Predicated region
      $region9: #{tpu_custom_call.1} parent=5 // pred_check
        _
      $region10: #{tpu_custom_call.1} parent=5 // pred_check_branch
        %71 = sbr.rel (%p68) target = $region12
      $region11: #{tpu_custom_call.1} parent=5 // pred_region
        %s72 = ssub.s32 %s11, 1
        // Predicated region
        $region13: #{tpu_custom_call.1} parent=11 // pred_check
          %p73 = pneg %p32
        $region14: #{tpu_custom_call.1} parent=11 // pred_check_branch
          %75 = sbr.rel (%p73) target = $region16
        $region15: #{tpu_custom_call.1} parent=11 // pred_region
          %s77 = ssub.s32 128, 128
          %78 = vsyncadd [#allocation3], %s77
          %s80 = sshll.u32 [#allocation2], 4
          %s81 = int_to_ptr.vmem [resolvable:$true] %s80
          %83 = dma.hbm_to_vmem [thread:$0]  %s0, 128, %s81, [#allocation3]
        $region16: #{tpu_custom_call.1} parent=11 // pred_fallthru
          _
      $region12: #{tpu_custom_call.1} parent=5 // pred_fallthru
        _
      %p84 = scmp.lt.s32.totalorder %s11, 2
      // Predicated region
      $region17: #{tpu_custom_call.1} parent=5 // pred_check
        %p85 = pneg %p84
      $region18: #{tpu_custom_call.1} parent=5 // pred_check_branch
        %87 = sbr.rel (%p85) target = $region20
      $region19: #{tpu_custom_call.1} parent=5 // pred_region
        _
      $region20: #{tpu_custom_call.1} parent=5 // pred_fallthru
        _
      %p88 = scmp.le.s32.totalorder 1, %s11
      %p89 = scmp.lt.s32.totalorder %s11, 3
      %p90 = pnand %p88, %p89
      %p91 = pneg %p90
      // Predicated region
      $region21: #{tpu_custom_call.1} parent=5 // pred_check
        _
      $region22: #{tpu_custom_call.1} parent=5 // pred_check_branch
        %93 = sbr.rel (%p90) target = $region24
      $region23: #{tpu_custom_call.1} parent=5 // pred_region
        %s94 = ssub.s32 %s11, 1
        // Predicated region
        $region25: #{tpu_custom_call.1} parent=23 // pred_check
          %p95 = pneg %p32
        $region26: #{tpu_custom_call.1} parent=23 // pred_check_branch
          %97 = sbr.rel (%p95) target = $region28
        $region27: #{tpu_custom_call.1} parent=23 // pred_region
          %98 = dma.done [#allocation3], 128
        $region28: #{tpu_custom_call.1} parent=23 // pred_fallthru
          _
        %p99 = pneg %p32
        %p100 = pneg %p29
        %p101 = pneg %p58
        %p102 = pneg %p55
        %s103 = sand.u32 %s45, 1
        %s104 = scalar_lea.sflag [#allocation4], %s103
        %s105 = sand.u32 %s45, 1
        %s106 = smul.addr %s105, 8
        %s107 = scalar_lea.vmem [#allocation5], %s106
        %v108 = vld [vmem:[#allocation2] sm:$0xff]
        %v109 = vmul.f32 %v108, 2.0
        %110 = vst [vmem:[%s107] sm:$0xff] %v109
        %s111 = sand.u32 %s45, 1
        %s112 = scalar_lea.sflag [#allocation4], %s111
        %s113 = sand.u32 %s45, 1
        %s114 = smul.addr %s113, 8
        %s115 = scalar_lea.vmem [#allocation5], %s114
        // Predicated region
        $region29: #{tpu_custom_call.1} parent=23 // pred_check
          %p116 = pneg %p55
        $region30: #{tpu_custom_call.1} parent=23 // pred_check_branch
          %118 = sbr.rel (%p116) target = $region32
        $region31: #{tpu_custom_call.1} parent=23 // pred_region
          %s120 = ssub.s32 128, 128
          %121 = vsyncadd %s112, %s120
          %s122 = smul.addr %s16, 128
          %s123 = scalar_lea.hbm %s1, %s122
          %s125 = sshll.u32 %s115, 4
          %s126 = int_to_ptr.vmem [resolvable:$true] %s125
          %128 = dma.vmem_to_hbm [thread:$0]  %s126, 128, %s123, %s112
        $region32: #{tpu_custom_call.1} parent=23 // pred_fallthru
          _
      $region24: #{tpu_custom_call.1} parent=5 // pred_fallthru
        _
      %p129 = scmp.le.s32.totalorder 2, %s11
      // Predicated region
      $region33: #{tpu_custom_call.1} parent=5 // pred_check
        %p130 = pneg %p129
      $region34: #{tpu_custom_call.1} parent=5 // pred_check_branch
        %132 = sbr.rel (%p130) target = $region36
      $region35: #{tpu_custom_call.1} parent=5 // pred_region
        %s133 = ssub.s32 %s11, 2
        // Predicated region
        $region37: #{tpu_custom_call.1} parent=35 // pred_check
          %p134 = pneg %p61
        $region38: #{tpu_custom_call.1} parent=35 // pred_check_branch
          %136 = sbr.rel (%p134) target = $region40
        $region39: #{tpu_custom_call.1} parent=35 // pred_region
          %s137 = sand.u32 %s46, 1
          %s138 = scalar_lea.sflag [#allocation4], %s137
          %s139 = sand.u32 %s46, 1
          %s140 = smul.addr %s139, 8
          %s141 = scalar_lea.vmem [#allocation5], %s140
          %142 = dma.done %s138, 128
        $region40: #{tpu_custom_call.1} parent=35 // pred_fallthru
          _
      $region36: #{tpu_custom_call.1} parent=5 // pred_fallthru
        _
    $region6: #{tpu_custom_call.1} parent=1 // loop_footer
      %s15 = sadd.s32 1, %s11
    $region7: #{tpu_custom_call.1} parent=1 // loop_footer_branch
      %10 = sbr.rel target = $region3
    $region8: #{tpu_custom_call.1} parent=1 // loop_exit
      _
    %143 = vsyncpa [#allocation3], 1
    %s144 = scalar_lea.sflag [#allocation3], 1
    %145 = vsyncpa %s144, 1
    %146 = vsyncpa [#allocation4], 1
    %s147 = scalar_lea.sflag [#allocation4], 1
    %148 = vsyncpa %s147, 1

// kernel: roberta_lm_head3.1
$region0: #{roberta_lm_head3.1}
  #allocation0 [shape = 'u32[]', space=smem, size = 0x4, offset = 0x4, fixed_abs, tag = 'smem constant byte address 0x4 - core index']
  #allocation1 [shape = 'u32[144,128]{1,0:T(1,128)}', space=vmem, size = 0x12000, scoped, tag = 'internal scratch']
  %s0 = inlined_call_operand.hbm [shape: f32[16,32], index: 0, kind: input, shape index: {}]
  %s1 = inlined_call_operand.hbm [shape: f32[32,32], index: 1, kind: input, shape index: {}]
  %s2 = inlined_call_operand.vmem [shape: f32[1,32], index: 2, kind: input, shape index: {}]
  %s3 = inlined_call_operand.hbm [shape: f32[32,128], index: 3, kind: input, shape index: {}]
  %s4 = inlined_call_operand.vmem [shape: f32[1,128], index: 4, kind: input, shape index: {}]
  %s5 = inlined_call_operand.vmem [shape: f32[16,128], index: 5, kind: output, shape index: {}]
  %s6 = sld [smem:[#allocation0]]
  $region65: #{roberta_lm_head3.1} parent=0
    _
  %s8 = ssub.s32 1, %s6
  %s9 = scalar_select 0, %s8, %s6
  $region1: #{roberta_lm_head3.1} parent=0
    #allocation2 [shape = 'u8[8192]{0}', space=vmem, size = 0x2000, scoped, tag = 'input window, operand 0']
    #allocation3 [shape = 's32[2]{0}', space=sflag, size = 0x8, scoped, tag = 'scoped memory for roberta_lm_head3.1']
    #allocation4 [shape = 'u8[16384]{0}', space=vmem, size = 0x4000, scoped, tag = 'input window, operand 1, single buffered']
    #allocation5 [shape = 's32[1]{0}', space=sflag, size = 0x4, scoped, tag = 'scoped memory for roberta_lm_head3.1']
    #allocation6 [shape = 'u8[16384]{0}', space=vmem, size = 0x4000, scoped, tag = 'input window, operand 3, single buffered']
    %10 = vsyncpa [#allocation3], 0
    %s11 = scalar_lea.sflag [#allocation3], 1
    %12 = vsyncpa %s11, 0
    %13 = vsyncpa [#allocation5], 0
    loop: start=0, step=1, limit=4
    $region2: #{roberta_lm_head3.1} parent=1 // loop_pre_header
      _
    $region3: #{roberta_lm_head3.1} parent=1 // loop_header
      %s15 = sphi 0, %s19
      %p16 = scmp.ge.s32.totalorder %s15, 4
      %s25 = sphi 0, %s27
      %s28 = sphi 0, %s25
      %s29 = sphi 0, %s28
      %s45 = sphi 0, %s29
      %s49 = sphi 0, %s49
      %s51 = sphi 0, %s49
      %s52 = sphi 0, %s51
      %s66 = sphi 0, %s52
      %s70 = sphi 0, %s70
      %s72 = sphi 0, %s70
      %s73 = sphi 0, %s72
      %s87 = sphi 0, %s73
      %s91 = sphi 0, %s91
      %s93 = sphi 0, %s91
      %s94 = sphi 0, %s93
      %s108 = sphi 0, %s94
      %s112 = sphi 0, %s112
      %s114 = sphi 0, %s112
      %s115 = sphi 0, %s114
      %s129 = sphi 0, %s115
      %s135 = sphi 0, %s137
      %s138 = sphi 0, %s135
      %s139 = sphi 0, %s138
      %s155 = sphi 0, %s139
    $region4: #{roberta_lm_head3.1} parent=1 // loop_header_branch
      %18 = sbr.rel (%p16) target = $region8
    $region5: #{roberta_lm_head3.1} parent=1 // loop_body
      %s20 = ssub.s32 %s15, 1
      %s21 = ssub.s32 %s15, 2
      %s22 = sadd.s32 %s15, 1
      %s23 = ssub.s32 %s15, %s22
      %p24 = scmp.eq.s32.totalorder %s23, 0
      %s26 = sadd.s32 %s25, 1
      %s27 = scalar_select %p24, %s25, %s26
      %p30 = pneg %p24
      %p31 = scmp.eq.s32.totalorder %s15, 1
      %p32 = por %p30, %p31
      %p33 = scmp.ne.s32.totalorder %s25, %s28
      %p34 = scmp.eq.s32.totalorder %s15, 0
      %p35 = por %p33, %p34
      %p36 = scmp.ne.s32.totalorder %s25, %s28
      %p37 = scmp.eq.s32.totalorder %s20, 1
      %p38 = por %p36, %p37
      %p39 = scmp.ne.s32.totalorder %s28, %s29
      %p40 = scmp.eq.s32.totalorder %s20, 0
      %p41 = por %p39, %p40
      %p42 = scmp.ne.s32.totalorder %s28, %s29
      %p43 = scmp.eq.s32.totalorder %s21, 1
      %p44 = por %p42, %p43
      %p46 = scmp.ne.s32.totalorder %s29, %s45
      %p47 = scmp.eq.s32.totalorder %s21, 0
      %p48 = por %p46, %p47
      %s50 = sadd.s32 %s49, 1
      %p53 = scmp.eq.s32.totalorder %s15, 1
      %p54 = scmp.ne.s32.totalorder %s49, %s51
      %p55 = scmp.eq.s32.totalorder %s15, 0
      %p56 = por %p54, %p55
      %p57 = scmp.ne.s32.totalorder %s49, %s51
      %p58 = scmp.eq.s32.totalorder %s20, 1
      %p59 = por %p57, %p58
      %p60 = scmp.ne.s32.totalorder %s51, %s52
      %p61 = scmp.eq.s32.totalorder %s20, 0
      %p62 = por %p60, %p61
      %p63 = scmp.ne.s32.totalorder %s51, %s52
      %p64 = scmp.eq.s32.totalorder %s21, 1
      %p65 = por %p63, %p64
      %p67 = scmp.ne.s32.totalorder %s52, %s66
      %p68 = scmp.eq.s32.totalorder %s21, 0
      %p69 = por %p67, %p68
      %s71 = sadd.s32 %s70, 1
      %p74 = scmp.eq.s32.totalorder %s15, 1
      %p75 = scmp.ne.s32.totalorder %s70, %s72
      %p76 = scmp.eq.s32.totalorder %s15, 0
      %p77 = por %p75, %p76
      %p78 = scmp.ne.s32.totalorder %s70, %s72
      %p79 = scmp.eq.s32.totalorder %s20, 1
      %p80 = por %p78, %p79
      %p81 = scmp.ne.s32.totalorder %s72, %s73
      %p82 = scmp.eq.s32.totalorder %s20, 0
      %p83 = por %p81, %p82
      %p84 = scmp.ne.s32.totalorder %s72, %s73
      %p85 = scmp.eq.s32.totalorder %s21, 1
      %p86 = por %p84, %p85
      %p88 = scmp.ne.s32.totalorder %s73, %s87
      %p89 = scmp.eq.s32.totalorder %s21, 0
      %p90 = por %p88, %p89
      %s92 = sadd.s32 %s91, 1
      %p95 = scmp.eq.s32.totalorder %s15, 1
      %p96 = scmp.ne.s32.totalorder %s91, %s93
      %p97 = scmp.eq.s32.totalorder %s15, 0
      %p98 = por %p96, %p97
      %p99 = scmp.ne.s32.totalorder %s91, %s93
      %p100 = scmp.eq.s32.totalorder %s20, 1
      %p101 = por %p99, %p100
      %p102 = scmp.ne.s32.totalorder %s93, %s94
      %p103 = scmp.eq.s32.totalorder %s20, 0
      %p104 = por %p102, %p103
      %p105 = scmp.ne.s32.totalorder %s93, %s94
      %p106 = scmp.eq.s32.totalorder %s21, 1
      %p107 = por %p105, %p106
      %p109 = scmp.ne.s32.totalorder %s94, %s108
      %p110 = scmp.eq.s32.totalorder %s21, 0
      %p111 = por %p109, %p110
      %s113 = sadd.s32 %s112, 1
      %p116 = scmp.eq.s32.totalorder %s15, 1
      %p117 = scmp.ne.s32.totalorder %s112, %s114
      %p118 = scmp.eq.s32.totalorder %s15, 0
      %p119 = por %p117, %p118
      %p120 = scmp.ne.s32.totalorder %s112, %s114
      %p121 = scmp.eq.s32.totalorder %s20, 1
      %p122 = por %p120, %p121
      %p123 = scmp.ne.s32.totalorder %s114, %s115
      %p124 = scmp.eq.s32.totalorder %s20, 0
      %p125 = por %p123, %p124
      %p126 = scmp.ne.s32.totalorder %s114, %s115
      %p127 = scmp.eq.s32.totalorder %s21, 1
      %p128 = por %p126, %p127
      %p130 = scmp.ne.s32.totalorder %s115, %s129
      %p131 = scmp.eq.s32.totalorder %s21, 0
      %p132 = por %p130, %p131
      %s133 = ssub.s32 %s15, %s22
      %p134 = scmp.eq.s32.totalorder %s133, 0
      %s136 = sadd.s32 %s135, 1
      %s137 = scalar_select %p134, %s135, %s136
      %p140 = pneg %p134
      %p141 = scmp.eq.s32.totalorder %s15, 1
      %p142 = por %p140, %p141
      %p143 = scmp.ne.s32.totalorder %s135, %s138
      %p144 = scmp.eq.s32.totalorder %s15, 0
      %p145 = por %p143, %p144
      %p146 = scmp.ne.s32.totalorder %s135, %s138
      %p147 = scmp.eq.s32.totalorder %s20, 1
      %p148 = por %p146, %p147
      %p149 = scmp.ne.s32.totalorder %s138, %s139
      %p150 = scmp.eq.s32.totalorder %s20, 0
      %p151 = por %p149, %p150
      %p152 = scmp.ne.s32.totalorder %s138, %s139
      %p153 = scmp.eq.s32.totalorder %s21, 1
      %p154 = por %p152, %p153
      %p156 = scmp.ne.s32.totalorder %s139, %s155
      %p157 = scmp.eq.s32.totalorder %s21, 0
      %p158 = por %p156, %p157
      %p159 = scmp.le.s32.totalorder 1, %s15
      %p160 = scmp.lt.s32.totalorder %s15, 3
      %p161 = pnand %p159, %p160
      %p162 = pneg %p161
      // Predicated region
      $region9: #{roberta_lm_head3.1} parent=5 // pred_check
        _
      $region10: #{roberta_lm_head3.1} parent=5 // pred_check_branch
        %164 = sbr.rel (%p161) target = $region12
      $region11: #{roberta_lm_head3.1} parent=5 // pred_region
        %s165 = ssub.s32 %s15, 1
        // Predicated region
        $region13: #{roberta_lm_head3.1} parent=11 // pred_check
          %p166 = pneg %p62
        $region14: #{roberta_lm_head3.1} parent=11 // pred_check_branch
          %168 = sbr.rel (%p166) target = $region16
        $region15: #{roberta_lm_head3.1} parent=11 // pred_region
          %s170 = ssub.s32 512, 512
          %171 = vsyncadd [#allocation5], %s170
          %s172 = sshll.u32 [#allocation4], 4
          %s173 = int_to_ptr.vmem [resolvable:$true] %s172
          %178 = dma.hbm_to_vmem [thread:$0]  %s1, 512, %s173, [#allocation5], 128, 128, 8
        $region16: #{roberta_lm_head3.1} parent=11 // pred_fallthru
          _
        // Predicated region
        $region17: #{roberta_lm_head3.1} parent=11 // pred_check
          %p179 = pneg %p83
        $region18: #{roberta_lm_head3.1} parent=11 // pred_check_branch
          %181 = sbr.rel (%p179) target = $region20
        $region19: #{roberta_lm_head3.1} parent=11 // pred_region
          _
        $region20: #{roberta_lm_head3.1} parent=11 // pred_fallthru
          _
        // Predicated region
        $region21: #{roberta_lm_head3.1} parent=11 // pred_check
          %p182 = pneg %p104
        $region22: #{roberta_lm_head3.1} parent=11 // pred_check_branch
          %184 = sbr.rel (%p182) target = $region24
        $region23: #{roberta_lm_head3.1} parent=11 // pred_region
          %s186 = ssub.s32 512, 512
          %187 = vsyncadd [#allocation5], %s186
          %s188 = sshll.u32 [#allocation6], 4
          %s189 = int_to_ptr.vmem [resolvable:$true] %s188
          %194 = dma.hbm_to_vmem [thread:$0]  %s3, 512, %s189, [#allocation5], 128, 128, 8
        $region24: #{roberta_lm_head3.1} parent=11 // pred_fallthru
          _
        // Predicated region
        $region25: #{roberta_lm_head3.1} parent=11 // pred_check
          %p195 = pneg %p125
        $region26: #{roberta_lm_head3.1} parent=11 // pred_check_branch
          %197 = sbr.rel (%p195) target = $region28
        $region27: #{roberta_lm_head3.1} parent=11 // pred_region
          _
        $region28: #{roberta_lm_head3.1} parent=11 // pred_fallthru
          _
      $region12: #{roberta_lm_head3.1} parent=5 // pred_fallthru
        _
      %p198 = scmp.lt.s32.totalorder %s15, 2
      // Predicated region
      $region29: #{roberta_lm_head3.1} parent=5 // pred_check
        %p199 = pneg %p198
      $region30: #{roberta_lm_head3.1} parent=5 // pred_check_branch
        %201 = sbr.rel (%p199) target = $region32
      $region31: #{roberta_lm_head3.1} parent=5 // pred_region
        // Predicated region
        $region33: #{roberta_lm_head3.1} parent=31 // pred_check
          %p202 = pneg %p35
        $region34: #{roberta_lm_head3.1} parent=31 // pred_check_branch
          %204 = sbr.rel (%p202) target = $region36
        $region35: #{roberta_lm_head3.1} parent=31 // pred_region
          %s205 = sand.u32 %s25, 1
          %s206 = scalar_lea.sflag [#allocation3], %s205
          %s207 = sand.u32 %s25, 1
          %s208 = smul.addr %s207, 8
          %s209 = scalar_lea.vmem [#allocation2], %s208
          %s211 = ssub.s32 128, 128
          %212 = vsyncadd %s206, %s211
          %s213 = smul.addr %s15, 128
          %s214 = scalar_lea.hbm %s0, %s213
          %s216 = sshll.u32 %s209, 4
          %s217 = int_to_ptr.vmem [resolvable:$true] %s216
          %219 = dma.hbm_to_vmem [thread:$0]  %s214, 128, %s217, %s206
        $region36: #{roberta_lm_head3.1} parent=31 // pred_fallthru
          _
      $region32: #{roberta_lm_head3.1} parent=5 // pred_fallthru
        _
      %p220 = scmp.le.s32.totalorder 1, %s15
      %p221 = scmp.lt.s32.totalorder %s15, 3
      %p222 = pnand %p220, %p221
      %p223 = pneg %p222
      // Predicated region
      $region37: #{roberta_lm_head3.1} parent=5 // pred_check
        _
      $region38: #{roberta_lm_head3.1} parent=5 // pred_check_branch
        %225 = sbr.rel (%p222) target = $region40
      $region39: #{roberta_lm_head3.1} parent=5 // pred_region
        %s226 = ssub.s32 %s15, 1
        %s227 = sand.u32 %s28, 1
        %s228 = scalar_lea.sflag [#allocation3], %s227
        %s229 = sand.u32 %s28, 1
        %s230 = smul.addr %s229, 8
        %s231 = scalar_lea.vmem [#allocation2], %s230
        // Predicated region
        $region41: #{roberta_lm_head3.1} parent=39 // pred_check
          %p232 = pneg %p41
        $region42: #{roberta_lm_head3.1} parent=39 // pred_check_branch
          %234 = sbr.rel (%p232) target = $region44
        $region43: #{roberta_lm_head3.1} parent=39 // pred_region
          %235 = dma.done %s228, 128
        $region44: #{roberta_lm_head3.1} parent=39 // pred_fallthru
          _
        // Predicated region
        $region45: #{roberta_lm_head3.1} parent=39 // pred_check
          %p236 = pneg %p62
        $region46: #{roberta_lm_head3.1} parent=39 // pred_check_branch
          %238 = sbr.rel (%p236) target = $region48
        $region47: #{roberta_lm_head3.1} parent=39 // pred_region
          %239 = dma.done [#allocation5], 512
        $region48: #{roberta_lm_head3.1} parent=39 // pred_fallthru
          _
        // Predicated region
        $region49: #{roberta_lm_head3.1} parent=39 // pred_check
          %p240 = pneg %p104
        $region50: #{roberta_lm_head3.1} parent=39 // pred_check_branch
          %242 = sbr.rel (%p240) target = $region52
        $region51: #{roberta_lm_head3.1} parent=39 // pred_region
          %243 = dma.done [#allocation5], 512
        $region52: #{roberta_lm_head3.1} parent=39 // pred_fallthru
          _
        %s244 = sand.u32 %s28, 1
        %s245 = scalar_lea.sflag [#allocation3], %s244
        %s246 = sand.u32 %s28, 1
        %s247 = smul.addr %s246, 8
        %s248 = scalar_lea.vmem [#allocation2], %s247
        %p249 = pneg %p41
        %p250 = pneg %p38
        %p251 = pneg %p62
        %p252 = pneg %p59
        %p253 = pneg %p83
        %p254 = pneg %p80
        %p255 = pneg %p104
        %p256 = pneg %p101
        %p257 = pneg %p125
        %p258 = pneg %p122
        %p259 = pneg %p151
        %p260 = pneg %p148
        %p261 = scmp.lt.s32.totalorder %s20, 1
        %s262 = scalar_select %p261, %s20, 1
        %s263 = smul.addr %s262, 8
        %s264 = scalar_lea.vmem %s5, %s263
        %p265 = scmp.lt.s32.totalorder %s20, 1
        %s266 = scalar_select %p265, %s20, 1
        %s267 = smul.addr %s266, 8
        %s268 = scalar_lea.vmem %s5, %s267
        %v269 = vld [vmem:[%s231] sm:$0xff]
        %v270 = vld [vmem:[#allocation4] sm:$0xff]
        %v271 = vld [vmem:[#allocation4 + $0x8] sm:$0xff]
        %v272 = vld [vmem:[#allocation4 + $0x10] sm:$0xff]
        %v273 = vld [vmem:[#allocation4 + $0x18] sm:$0xff]
        %v274 = vld [vmem:[%s2] sm:$0x1]
        %v276 = vlaneseq
        %v277 = vshrl.u32 %v276, 7
        %v278 = vsub.s32 0, %v277
        %v279 = vrot.slane %v274, %v278
        %vm281 = vcmask 261120
        %v283 = vsel %vm281, %v269, 0
        %285 = vmatprep.subr.mxu0 0.0
        %286 = vmatpush1.msra.mxu0 %v270
        %287 = vmatprep.subr.mxu0 0.0
        %288 = vmatpush1.msra.mxu0 %v271
        %289 = vmatprep.subr.mxu0 0.0
        %290 = vmatpush1.msra.mxu0 %v272
        %291 = vmatprep.subr.mxu0 0.0
        %292 = vmatpush1.msra.mxu0 %v273
        %293 = vmatprep.subr.mxu0 0.0
        %294 = vmatpush1.msra.mxu0 0.0
        %295 = vmatprep.subr.mxu0 0.0
        %296 = vmatpush1.msra.mxu0 0.0
        %297 = vmatprep.subr.mxu0 0.0
        %298 = vmatpush1.msra.mxu0 0.0
        %299 = vmatprep.subr.mxu0 0.0
        %300 = vmatpush1.msra.mxu0 0.0
        %301 = vmatprep.subr.mxu0 0.0
        %302 = vmatpush1.msra.mxu0 0.0
        %303 = vmatprep.subr.mxu0 0.0
        %304 = vmatpush1.msra.mxu0 0.0
        %305 = vmatprep.subr.mxu0 0.0
        %306 = vmatpush1.msra.mxu0 0.0
        %307 = vmatprep.subr.mxu0 0.0
        %308 = vmatpush1.msra.mxu0 0.0
        %309 = vmatprep.subr.mxu0 0.0
        %310 = vmatpush1.msra.mxu0 0.0
        %311 = vmatprep.subr.mxu0 0.0
        %312 = vmatpush1.msra.mxu0 0.0
        %313 = vmatprep.subr.mxu0 0.0
        %314 = vmatpush1.msra.mxu0 0.0
        %315 = vmatprep.subr.mxu0 0.0
        %316 = vmatpush1.msra.mxu0 0.0
        %317 = vmatprep.subr.mxu0 0.0
        %318 = vmatpush1.msra.mxu0 0.0
        %319 = vmatprep.subr.mxu0 0.0
        %320 = vmatpush1.msra.mxu0 0.0
        %321 = vmatprep.subr.mxu0 0.0
        %322 = vmatpush1.msra.mxu0 0.0
        %323 = vmatprep.subr.mxu0 0.0
        %324 = vmatpush1.msra.mxu0 0.0
        %325 = vmatprep.subr.mxu0 0.0
        %326 = vmatpush1.msra.mxu0 0.0
        %327 = vmatprep.subr.mxu0 0.0
        %328 = vmatpush1.msra.mxu0 0.0
        %329 = vmatprep.subr.mxu0 0.0
        %330 = vmatpush1.msra.mxu0 0.0
        %331 = vmatprep.subr.mxu0 0.0
        %332 = vmatpush1.msra.mxu0 0.0
        %333 = vmatprep.subr.mxu0 0.0
        %334 = vmatpush1.msra.mxu0 0.0
        %335 = vmatprep.subr.mxu0 0.0
        %336 = vmatpush1.msra.mxu0 0.0
        %337 = vmatprep.subr.mxu0 0.0
        %338 = vmatpush1.msra.mxu0 0.0
        %339 = vmatprep.subr.mxu0 0.0
        %340 = vmatpush1.msra.mxu0 0.0
        %341 = vmatprep.subr.mxu0 0.0
        %342 = vmatpush1.msra.mxu0 0.0
        %343 = vmatprep.subr.mxu0 0.0
        %344 = vmatpush1.msra.mxu0 0.0
        %345 = vmatprep.subr.mxu0 0.0
        %346 = vmatpush1.msra.mxu0 0.0
        %347 = vmatprep.subr.mxu0 0.0
        %348 = vmatpush1.msra.mxu0 0.0
        %349 = vmatprep.mubr.f32.mxu0 0.0
        %350 = vmatmul.mubr.f32.gmra.mrb[0].mxu0 %v283
        %v351 = vpop.f32.mrb[0].mxu0
        %v352 = vadd.f32 %v279, %v351
        %v353 = vpop.f32.mrb[0].mxu0
        %354 = vdwg.mxu0
        %v355 = vmul.f32 %v352, 0.5
        %v356 = vmul.f32 %v352, 0.70710677
        %v357 = verf.f32.pop %v356
        %v358 = vadd.f32 %v357, 1.0
        %v359 = vmul.f32 %v355, %v358
        %v360 = vsel %vm281, %v359, 0.0
        %361 = vadd.xlane.f32.xlu0 %v360
        %v362 = vpop.xlane.xlu0 %361
        %v363 = vmul.f32 %v359, %v359
        %v364 = vsel %vm281, %v363, 0.0
        %365 = vadd.xlane.f32.xlu0 %v364
        %v366 = vpop.xlane.xlu0 %365
        %v367 = vmul.f32 %v362, 0.03125
        %v368 = vmul.f32 %v366, 0.03125
        %v369 = vmul.f32 %v367, %v367
        %v370 = vsub.f32 %v368, %v369
        %v371 = vmax.f32 %v370, 0.0
        %v372 = vadd.f32 %v371, 1e-05
        %v373 = vrsqrt.pop %v372
        %v374 = vsub.f32 %v359, %v367
        %v375 = vmul.f32 %v374, %v373
        %v376 = vld [vmem:[#allocation6] sm:$0xff]
        %v377 = vld [vmem:[#allocation6 + $0x8] sm:$0xff]
        %v378 = vld [vmem:[#allocation6 + $0x10] sm:$0xff]
        %v379 = vld [vmem:[#allocation6 + $0x18] sm:$0xff]
        %v380 = vld [vmem:[%s4] sm:$0x1]
        %v382 = vlaneseq
        %v383 = vshrl.u32 %v382, 7
        %v384 = vsub.s32 0, %v383
        %v385 = vrot.slane %v380, %v384
        %v388 = vsel %vm281, %v375, 0
        %390 = vmatprep.subr.mxu0 0.0
        %391 = vmatpush1.msra.mxu0 %v376
        %392 = vmatprep.subr.mxu0 0.0
        %393 = vmatpush1.msra.mxu0 %v377
        %394 = vmatprep.subr.mxu0 0.0
        %395 = vmatpush1.msra.mxu0 %v378
        %396 = vmatprep.subr.mxu0 0.0
        %397 = vmatpush1.msra.mxu0 %v379
        %398 = vmatprep.subr.mxu0 0.0
        %399 = vmatpush1.msra.mxu0 0.0
        %400 = vmatprep.subr.mxu0 0.0
        %401 = vmatpush1.msra.mxu0 0.0
        %402 = vmatprep.subr.mxu0 0.0
        %403 = vmatpush1.msra.mxu0 0.0
        %404 = vmatprep.subr.mxu0 0.0
        %405 = vmatpush1.msra.mxu0 0.0
        %406 = vmatprep.subr.mxu0 0.0
        %407 = vmatpush1.msra.mxu0 0.0
        %408 = vmatprep.subr.mxu0 0.0
        %409 = vmatpush1.msra.mxu0 0.0
        %410 = vmatprep.subr.mxu0 0.0
        %411 = vmatpush1.msra.mxu0 0.0
        %412 = vmatprep.subr.mxu0 0.0
        %413 = vmatpush1.msra.mxu0 0.0
        %414 = vmatprep.subr.mxu0 0.0
        %415 = vmatpush1.msra.mxu0 0.0
        %416 = vmatprep.subr.mxu0 0.0
        %417 = vmatpush1.msra.mxu0 0.0
        %418 = vmatprep.subr.mxu0 0.0
        %419 = vmatpush1.msra.mxu0 0.0
        %420 = vmatprep.subr.mxu0 0.0
        %421 = vmatpush1.msra.mxu0 0.0
        %422 = vmatprep.subr.mxu0 0.0
        %423 = vmatpush1.msra.mxu0 0.0
        %424 = vmatprep.subr.mxu0 0.0
        %425 = vmatpush1.msra.mxu0 0.0
        %426 = vmatprep.subr.mxu0 0.0
        %427 = vmatpush1.msra.mxu0 0.0
        %428 = vmatprep.subr.mxu0 0.0
        %429 = vmatpush1.msra.mxu0 0.0
        %430 = vmatprep.subr.mxu0 0.0
        %431 = vmatpush1.msra.mxu0 0.0
        %432 = vmatprep.subr.mxu0 0.0
        %433 = vmatpush1.msra.mxu0 0.0
        %434 = vmatprep.subr.mxu0 0.0
        %435 = vmatpush1.msra.mxu0 0.0
        %436 = vmatprep.subr.mxu0 0.0
        %437 = vmatpush1.msra.mxu0 0.0
        %438 = vmatprep.subr.mxu0 0.0
        %439 = vmatpush1.msra.mxu0 0.0
        %440 = vmatprep.subr.mxu0 0.0
        %441 = vmatpush1.msra.mxu0 0.0
        %442 = vmatprep.subr.mxu0 0.0
        %443 = vmatpush1.msra.mxu0 0.0
        %444 = vmatprep.subr.mxu0 0.0
        %445 = vmatpush1.msra.mxu0 0.0
        %446 = vmatprep.subr.mxu0 0.0
        %447 = vmatpush1.msra.mxu0 0.0
        %448 = vmatprep.subr.mxu0 0.0
        %449 = vmatpush1.msra.mxu0 0.0
        %450 = vmatprep.subr.mxu0 0.0
        %451 = vmatpush1.msra.mxu0 0.0
        %452 = vmatprep.subr.mxu0 0.0
        %453 = vmatpush1.msra.mxu0 0.0
        %454 = vmatprep.mubr.f32.mxu0 0.0
        %455 = vmatmul.mubr.f32.gmra.mrb[0].mxu0 %v388
        %v456 = vpop.f32.mrb[0].mxu0
        %v457 = vadd.f32 %v385, %v456
        %v458 = vpop.f32.mrb[0].mxu0
        %459 = vdwg.mxu0
        %460 = vst [vmem:[%s268] sm:$0xff] %v457
        %p461 = scmp.lt.s32.totalorder %s20, 1
        %s462 = scalar_select %p461, %s20, 1
        %s463 = smul.addr %s462, 8
        %s464 = scalar_lea.vmem %s5, %s463
        // Predicated region
        $region53: #{roberta_lm_head3.1} parent=39 // pred_check
          %p465 = pneg %p148
        $region54: #{roberta_lm_head3.1} parent=39 // pred_check_branch
          %467 = sbr.rel (%p465) target = $region56
        $region55: #{roberta_lm_head3.1} parent=39 // pred_region
          _
        $region56: #{roberta_lm_head3.1} parent=39 // pred_fallthru
          _
      $region40: #{roberta_lm_head3.1} parent=5 // pred_fallthru
        _
      %p468 = scmp.le.s32.totalorder 2, %s15
      // Predicated region
      $region57: #{roberta_lm_head3.1} parent=5 // pred_check
        %p469 = pneg %p468
      $region58: #{roberta_lm_head3.1} parent=5 // pred_check_branch
        %471 = sbr.rel (%p469) target = $region60
      $region59: #{roberta_lm_head3.1} parent=5 // pred_region
        %s472 = ssub.s32 %s15, 2
        // Predicated region
        $region61: #{roberta_lm_head3.1} parent=59 // pred_check
          %p473 = pneg %p154
        $region62: #{roberta_lm_head3.1} parent=59 // pred_check_branch
          %475 = sbr.rel (%p473) target = $region64
        $region63: #{roberta_lm_head3.1} parent=59 // pred_region
          %p476 = scmp.lt.s32.totalorder %s21, 1
          %s477 = scalar_select %p476, %s21, 1
          %s478 = smul.addr %s477, 8
          %s479 = scalar_lea.vmem %s5, %s478
        $region64: #{roberta_lm_head3.1} parent=59 // pred_fallthru
          _
      $region60: #{roberta_lm_head3.1} parent=5 // pred_fallthru
        _
    $region6: #{roberta_lm_head3.1} parent=1 // loop_footer
      %s19 = sadd.s32 1, %s15
    $region7: #{roberta_lm_head3.1} parent=1 // loop_footer_branch
      %14 = sbr.rel target = $region3
    $region8: #{roberta_lm_head3.1} parent=1 // loop_exit
      _
    %480 = vsyncpa [#allocation3], 1
    %s481 = scalar_lea.sflag [#allocation3], 1
    %482 = vsyncpa %s481, 1
    %483 = vsyncpa [#allocation5], 1

</llo_original>
